<compile_context>
chip_gen: v5e
topology: v5e:2x2
jax: 0.10.0
libtpu: 0.0.40
codegen_flags: <defaults>
</compile_context>

<pallas_src>
import jax
import jax.numpy as jnp
from jax.experimental import pallas as pl
from jax.experimental.pallas import tpu as pltpu

SUBLANE = 8


def _round_up(n, m):
    return pl.cdiv(n, m) * m


def valuenet_kernel(x_ref, w1_ref, b1_ref, w2_ref, b2_ref, o_ref):
    # Layer 1 on the MXU: (tb, K) @ (K, H), f32 accumulate. K=9 stays
    # unpadded; Mosaic masks the short contraction internally.
    h = jnp.dot(x_ref[...], w1_ref[...], preferred_element_type=jnp.float32)
    # Bias + ReLU in f32 on the VPU (v5e has no bf16 VPU).
    h = jnp.maximum(h + b1_ref[...], 0.0)                      # (tb, H) f32
    # Layer 2 (H -> 1) also on the MXU (idle anyway); avoids saturating the
    # XLU with ~7 rotate+adds per vreg that a lane reduction would cost.
    col = jnp.dot(h, w2_ref[...], preferred_element_type=jnp.float32)  # (tb, 1)
    # Lane-dense store: one (1, tb) row per grid step (unmasked stores,
    # tiny output VMEM buffer).  Accept the single (tb,1)->(1,tb) relayout.
    tb = col.shape[0]
    o_ref[...] = col.reshape(1, tb) + b2_ref[...]


def value_net_forward(x, w1, b1, w2, b2, *, tile_b=4096):
    """x: (B, state_dim) f32; w1: (state_dim, H); b1: (H,) or (1, H);
    w2: (H, 1); b2: (1,) or (1, 1).  Returns (B, 1) f32.

    tile_b=4096 is v7x-safe; v5e/v6e (128 MiB VMEM) can pass tile_b=8192."""
    B, K = x.shape
    H = w1.shape[1]

    # Batch tile: multiple of 8 sublanes, capped at tile_b.
    tb = min(tile_b, _round_up(B, SUBLANE))
    # Keep >= 2 grid steps for mid/large batches so the software pipeline has
    # DMA/compute to overlap and v7x's two TensorCores both get a shard.
    if tb >= B and B >= 2048:
        tb = _round_up(pl.cdiv(B, 2), SUBLANE)
    grid_b = pl.cdiv(B, tb)
    B_full = grid_b * tb            # rows >= B in the last tile are garbage

    # No pad / no dtype copy of x: it is fed straight through in f32.
    x_p = jnp.asarray(x, jnp.float32)
    w1_p = jnp.asarray(w1, jnp.float32)                  # (K, H), VMEM-resident
    b1_p = jnp.asarray(b1, jnp.float32).reshape(1, H)
    w2_p = jnp.asarray(w2, jnp.float32).reshape(H, 1)    # column for MXU dot
    b2_p = jnp.asarray(b2, jnp.float32).reshape(1, 1)

    # Advisory cost for XLA's scheduler: unpadded K, epilogue ~4 ops/h-elem.
    flops = 2 * B_full * K * H + 4 * B_full * H + B_full
    bytes_accessed = 4 * (B * K + K * H + 2 * H + 1 + B_full)

    vmem = pltpu.MemorySpace.VMEM
    out = pl.pallas_call(
        valuenet_kernel,
        out_shape=jax.ShapeDtypeStruct((grid_b, tb), jnp.float32),
        grid=(grid_b,),
        in_specs=[
            pl.BlockSpec((tb, K), lambda i: (i, 0), memory_space=vmem),
            pl.BlockSpec((K, H), lambda i: (0, 0), memory_space=vmem),
            pl.BlockSpec((1, H), lambda i: (0, 0), memory_space=vmem),
            pl.BlockSpec((H, 1), lambda i: (0, 0), memory_space=vmem),
            pl.BlockSpec((1, 1), lambda i: (0, 0), memory_space=vmem),
        ],
        out_specs=pl.BlockSpec((1, tb), lambda i: (i, 0), memory_space=vmem),
        compiler_params=pltpu.CompilerParams(
            dimension_semantics=("parallel",)),
        cost_estimate=pl.CostEstimate(
            flops=int(flops),
            transcendentals=0,
            bytes_accessed=int(bytes_accessed)),
    )(x_p, w1_p, b1_p, w2_p, b2_p)

    # Lane-dense (grid_b, tb) slab -> (B, 1); rows >= B (ragged tail) dropped.
    return out.reshape(B_full)[:B].reshape(B, 1)


def reference_forward(x, w1, b1, w2, b2):
    h = jnp.maximum(x @ w1 + b1, 0.0)
    return h @ w2 + b2


if __name__ == "__main__":
    # Small shapes consistent with the module: testEnv(dof=3) -> state_dim=9,
    # hidden_dim = [128].
    batch = 8
    state_dim = 9
    hidden = 128

    key = jax.random.PRNGKey(0)
    kx, k1, k2, k3, k4, kx2 = jax.random.split(key, 6)

    x = jax.random.normal(kx, (batch, state_dim), dtype=jnp.float32)

    # Deterministic synthetic parameters (Linear weights stored as (in, out)).
    bound1 = 1.0 / jnp.sqrt(state_dim)
    w1 = jax.random.uniform(k1, (state_dim, hidden), jnp.float32, -bound1, bound1)
    b1 = jax.random.uniform(k2, (hidden,), jnp.float32, -bound1, bound1)
    bound2 = 1.0 / jnp.sqrt(hidden)
    w2 = jax.random.uniform(k3, (hidden, 1), jnp.float32, -bound2, bound2)
    b2 = jax.random.uniform(k4, (1,), jnp.float32, -bound2, bound2)

    # Single-tile path.
    out = jax.block_until_ready(value_net_forward(x, w1, b1, w2, b2))
    ref = reference_forward(x, w1, b1, w2, b2)
    assert out.shape == (batch, 1)
    assert jnp.allclose(out, ref, atol=1e-3, rtol=1e-3), "mismatch vs reference"

    # Multi-tile + ragged-last-block path (3 grid steps of 8 rows over B=20).
    batch2 = 20
    x2 = jax.random.normal(kx2, (batch2, state_dim), dtype=jnp.float32)
    out2 = jax.block_until_ready(value_net_forward(x2, w1, b1, w2, b2, tile_b=8))
    ref2 = reference_forward(x2, w1, b1, w2, b2)
    assert out2.shape == (batch2, 1)
    assert jnp.allclose(out2, ref2, atol=1e-3, rtol=1e-3), "mismatch (multi-tile)"

    print("KERNEL_OK")
</pallas_src>

<mosaic_0001>
module attributes {stable_mosaic.version = 11 : i64} {
  func.func @valuenet_kernel(%arg0: i32, %arg1: memref<8x9xf32, #tpu.memory_space<vmem>>, %arg2: memref<9x128xf32, #tpu.memory_space<vmem>>, %arg3: memref<1x128xf32, #tpu.memory_space<vmem>>, %arg4: memref<128x1xf32, #tpu.memory_space<vmem>>, %arg5: memref<1x1xf32, #tpu.memory_space<vmem>>, %arg6: memref<1x8xf32, #tpu.memory_space<vmem>>) attributes {dimension_semantics = [#tpu.dimension_semantics<parallel>], iteration_bounds = array<i64: 1>, scalar_prefetch = 0 : i64, scratch_operands = 0 : i64, tpu.core_type = #tpu.core_type<tc>, window_params = [{transform_indices = @transform_0, window_bounds = array<i64: 8, 9>}, {pipeline_mode = #tpu.pipeline_mode<synchronous>, transform_indices = @transform_1, window_bounds = array<i64: 9, 128>}, {pipeline_mode = #tpu.pipeline_mode<synchronous>, transform_indices = @transform_2, window_bounds = array<i64: 1, 128>}, {pipeline_mode = #tpu.pipeline_mode<synchronous>, transform_indices = @transform_3, window_bounds = array<i64: 128, 1>}, {pipeline_mode = #tpu.pipeline_mode<synchronous>, transform_indices = @transform_4, window_bounds = array<i64: 1, 1>}, {transform_indices = @transform_5, window_bounds = array<i64: 1, 8>}]} {
    %c0 = arith.constant 0 : index
    %c0_0 = arith.constant 0 : index
    %0 = vector.load %arg1[%c0, %c0_0] : memref<8x9xf32, #tpu.memory_space<vmem>>, vector<8x9xf32>
    %c0_1 = arith.constant 0 : index
    %c0_2 = arith.constant 0 : index
    %1 = vector.load %arg2[%c0_1, %c0_2] : memref<9x128xf32, #tpu.memory_space<vmem>>, vector<9x128xf32>
    %cst = arith.constant dense<0.000000e+00> : vector<8x128xf32>
    %2 = tpu.matmul %0, %1, %cst {dimension_numbers = #tpu.dot_dimension_numbers<[1], [0], [0], [1], [0, 0, 1, 1], [], []>} : vector<8x9xf32>, vector<9x128xf32>, vector<8x128xf32> -> vector<8x128xf32>
    %c0_3 = arith.constant 0 : index
    %c0_4 = arith.constant 0 : index
    %3 = vector.load %arg3[%c0_3, %c0_4] : memref<1x128xf32, #tpu.memory_space<vmem>>, vector<1x128xf32>
    %4 = vector.broadcast %3 : vector<1x128xf32> to vector<8x128xf32>
    %5 = arith.addf %2, %4 : vector<8x128xf32>
    %cst_5 = arith.constant 0.000000e+00 : f32
    %6 = vector.broadcast %cst_5 : f32 to vector<8x128xf32>
    %7 = arith.maximumf %5, %6 : vector<8x128xf32>
    %c0_6 = arith.constant 0 : index
    %c0_7 = arith.constant 0 : index
    %8 = vector.load %arg4[%c0_6, %c0_7] : memref<128x1xf32, #tpu.memory_space<vmem>>, vector<128x1xf32>
    %cst_8 = arith.constant dense<0.000000e+00> : vector<8x1xf32>
    %9 = tpu.matmul %7, %8, %cst_8 {dimension_numbers = #tpu.dot_dimension_numbers<[1], [0], [0], [1], [0, 0, 1, 1], [], []>} : vector<8x128xf32>, vector<128x1xf32>, vector<8x1xf32> -> vector<8x1xf32>
    %10 = vector.shape_cast %9 : vector<8x1xf32> to vector<1x8xf32>
    %c0_9 = arith.constant 0 : index
    %c0_10 = arith.constant 0 : index
    %11 = vector.load %arg5[%c0_9, %c0_10] : memref<1x1xf32, #tpu.memory_space<vmem>>, vector<1x1xf32>
    %12 = vector.broadcast %11 : vector<1x1xf32> to vector<1x8xf32>
    %13 = arith.addf %10, %12 : vector<1x8xf32>
    %c0_11 = arith.constant 0 : index
    %c0_12 = arith.constant 0 : index
    %14 = vector.load %arg6[%c0_11, %c0_12] : memref<1x8xf32, #tpu.memory_space<vmem>>, vector<1x8xf32>
    tpu.vector_store %arg6[%c0_11, %c0_12], %13 {strides = array<i32>} : memref<1x8xf32, #tpu.memory_space<vmem>>, vector<1x8xf32>,
    return
  }
  func.func @transform_0(%arg0: i32) -> (i32, i32) {
    %c0_i32 = arith.constant 0 : i32
    %c0_i32_0 = arith.constant 0 : i32
    return %arg0, %c0_i32 : i32, i32
  }
  func.func @transform_1(%arg0: i32) -> (i32, i32) {
    %c0_i32 = arith.constant 0 : i32
    %c0_i32_0 = arith.constant 0 : i32
    %c0_i32_1 = arith.constant 0 : i32
    return %c0_i32, %c0_i32_0 : i32, i32
  }
  func.func @transform_2(%arg0: i32) -> (i32, i32) {
    %c0_i32 = arith.constant 0 : i32
    %c0_i32_0 = arith.constant 0 : i32
    %c0_i32_1 = arith.constant 0 : i32
    return %c0_i32, %c0_i32_0 : i32, i32
  }
  func.func @transform_3(%arg0: i32) -> (i32, i32) {
    %c0_i32 = arith.constant 0 : i32
    %c0_i32_0 = arith.constant 0 : i32
    %c0_i32_1 = arith.constant 0 : i32
    return %c0_i32, %c0_i32_0 : i32, i32
  }
  func.func @transform_4(%arg0: i32) -> (i32, i32) {
    %c0_i32 = arith.constant 0 : i32
    %c0_i32_0 = arith.constant 0 : i32
    %c0_i32_1 = arith.constant 0 : i32
    return %c0_i32, %c0_i32_0 : i32, i32
  }
  func.func @transform_5(%arg0: i32) -> (i32, i32) {
    %c0_i32 = arith.constant 0 : i32
    %c0_i32_0 = arith.constant 0 : i32
    return %arg0, %c0_i32 : i32, i32
  }
}

</mosaic_0001>

<llo_original>
// kernel: tpu_custom_call.1
$region0: #{tpu_custom_call.1}
  #allocation0 [shape = 'u32[]', space=smem, size = 0x4, offset = 0x4, fixed_abs, tag = 'smem constant byte address 0x4 - core index']
  #allocation1 [shape = 'u32[72,128]{1,0:T(1,128)}', space=vmem, size = 0x9000, scoped, tag = 'internal scratch']
  #allocation2 [shape = 'f32[1,1]{1,0:T(1,128)S(1)}', space=vmem, size = 0x200, scoped, tag = 'scoped memory for tpu_custom_call.1']
  %s0 = inlined_call_operand.vmem [shape: f32[8,9], index: 0, kind: input, shape index: {}]
  %s1 = inlined_call_operand.vmem [shape: f32[9,128], index: 1, kind: input, shape index: {}]
  %s2 = inlined_call_operand.vmem [shape: f32[1,128], index: 2, kind: input, shape index: {}]
  %s3 = inlined_call_operand.vmem [shape: f32[128,1], index: 3, kind: input, shape index: {}]
  %s4 = inlined_call_operand.<no memory space> [shape: f32[1,1], index: 4, kind: input, shape index: {}]
  %s5 = inlined_call_operand.hbm [shape: f32[1,8], index: 5, kind: output, shape index: {}]
  %s6 = sld [smem:[#allocation0]]
  $region30: #{tpu_custom_call.1} parent=0
    _
  %s8 = ssub.s32 1, %s6
  %s9 = scalar_select 0, %s8, %s6
  %v10 = vstv %s4
  %11 = vst [vmem:[#allocation2] sm:$0x1] %v10
  $region1: #{tpu_custom_call.1} parent=0
    #allocation3 [shape = 'u8[512]{0}', space=vmem, size = 0x400, scoped, tag = 'output window, operand 0, single buffered']
    #allocation4 [shape = 's32[1]{0}', space=sflag, size = 0x4, scoped, tag = 'scoped memory for tpu_custom_call.1']
    %12 = vsyncpa [#allocation4], 0
    // Predicated region
    $region2: #{tpu_custom_call.1} parent=1 // pred_check
      _
    $region3: #{tpu_custom_call.1} parent=1 // pred_check_branch
      %14 = sbr.rel (0) target = $region5
    $region4: #{tpu_custom_call.1} parent=1 // pred_region
      _
    $region5: #{tpu_custom_call.1} parent=1 // pred_fallthru
      _
    // Predicated region
    $region6: #{tpu_custom_call.1} parent=1 // pred_check
      _
    $region7: #{tpu_custom_call.1} parent=1 // pred_check_branch
      %16 = sbr.rel (0) target = $region9
    $region8: #{tpu_custom_call.1} parent=1 // pred_region
      _
    $region9: #{tpu_custom_call.1} parent=1 // pred_fallthru
      _
    // Predicated region
    $region10: #{tpu_custom_call.1} parent=1 // pred_check
      _
    $region11: #{tpu_custom_call.1} parent=1 // pred_check_branch
      %18 = sbr.rel (0) target = $region13
    $region12: #{tpu_custom_call.1} parent=1 // pred_region
      _
    $region13: #{tpu_custom_call.1} parent=1 // pred_fallthru
      _
    // Predicated region
    $region14: #{tpu_custom_call.1} parent=1 // pred_check
      _
    $region15: #{tpu_custom_call.1} parent=1 // pred_check_branch
      %20 = sbr.rel (0) target = $region17
    $region16: #{tpu_custom_call.1} parent=1 // pred_region
      _
    $region17: #{tpu_custom_call.1} parent=1 // pred_fallthru
      _
    // Predicated region
    $region18: #{tpu_custom_call.1} parent=1 // pred_check
      _
    $region19: #{tpu_custom_call.1} parent=1 // pred_check_branch
      %22 = sbr.rel (0) target = $region21
    $region20: #{tpu_custom_call.1} parent=1 // pred_region
      _
    $region21: #{tpu_custom_call.1} parent=1 // pred_fallthru
      _
    %v23 = vld [vmem:[%s0] sm:$0xff]
    %v24 = vld [vmem:[%s1] sm:$0xff]
    %v25 = vld [vmem:[%s1 + $0x8] sm:$0x1]
    %v26 = vld [vmem:[%s2] sm:$0x1]
    %v28 = vperm.slane %v26, 0
    %vm30 = vcmask 72704
    %v32 = vsel %vm30, %v23, 0
    %vm34 = vcmask 1040384
    %v36 = vsel %vm34, %v25, 0
    %38 = vmatpush.msra.mxu0 0.0
    %39 = vmatpush.msra.mxu0 0.0
    %40 = vmatpush.msra.mxu0 0.0
    %41 = vmatpush.msra.mxu0 0.0
    %42 = vmatpush.msra.mxu0 0.0
    %43 = vmatpush.msra.mxu0 0.0
    %44 = vmatpush.msra.mxu0 0.0
    %45 = vmatpush.msra.mxu0 0.0
    %46 = vmatpush.msra.mxu0 0.0
    %47 = vmatpush.msra.mxu0 0.0
    %48 = vmatpush.msra.mxu0 0.0
    %49 = vmatpush.msra.mxu0 0.0
    %50 = vmatpush.msra.mxu0 0.0
    %51 = vmatpush.msra.mxu0 0.0
    %52 = vmatpush.msra.mxu0 %v36
    %53 = vmatpush.msra.mxu0 %v24
    %54 = vmatmul.f32.gmra.mxu0 %v32
    %v55 = vpop.f32.mrf.mxu0
    %v56 = vadd.f32 %v28, %v55
    %57 = vdwg.mxu0
    %v58 = vmax.f32 %v56, 0.0
    %v59 = vld [vmem:[%s3] sm:$0xff]
    %v60 = vld [vmem:[%s3 + $0x8] sm:$0xff]
    %v61 = vld [vmem:[%s3 + $0x10] sm:$0xff]
    %v62 = vld [vmem:[%s3 + $0x18] sm:$0xff]
    %v63 = vld [vmem:[%s3 + $0x20] sm:$0xff]
    %v64 = vld [vmem:[%s3 + $0x28] sm:$0xff]
    %v65 = vld [vmem:[%s3 + $0x30] sm:$0xff]
    %v66 = vld [vmem:[%s3 + $0x38] sm:$0xff]
    %v67 = vld [vmem:[%s3 + $0x40] sm:$0xff]
    %v68 = vld [vmem:[%s3 + $0x48] sm:$0xff]
    %v69 = vld [vmem:[%s3 + $0x50] sm:$0xff]
    %v70 = vld [vmem:[%s3 + $0x58] sm:$0xff]
    %v71 = vld [vmem:[%s3 + $0x60] sm:$0xff]
    %v72 = vld [vmem:[%s3 + $0x68] sm:$0xff]
    %v73 = vld [vmem:[%s3 + $0x70] sm:$0xff]
    %v74 = vld [vmem:[%s3 + $0x78] sm:$0xff]
    %75 = vmatpush.msra.mxu0 %v74
    %76 = vmatpush.msra.mxu0 %v73
    %77 = vmatpush.msra.mxu0 %v72
    %78 = vmatpush.msra.mxu0 %v71
    %79 = vmatpush.msra.mxu0 %v70
    %80 = vmatpush.msra.mxu0 %v69
    %81 = vmatpush.msra.mxu0 %v68
    %82 = vmatpush.msra.mxu0 %v67
    %83 = vmatpush.msra.mxu0 %v66
    %84 = vmatpush.msra.mxu0 %v65
    %85 = vmatpush.msra.mxu0 %v64
    %86 = vmatpush.msra.mxu0 %v63
    %87 = vmatpush.msra.mxu0 %v62
    %88 = vmatpush.msra.mxu0 %v61
    %89 = vmatpush.msra.mxu0 %v60
    %90 = vmatpush.msra.mxu0 %v59
    %91 = vmatmul.f32.gmra.mxu0 %v58
    %v92 = vpop.f32.mrf.mxu0
    %v93 = vadd.f32 0.0, %v92
    %94 = vdwg.mxu0
    %v95 = vld [vmem:[#allocation2] sm:$0x1]
    %97 = vset.pattern.permute.xlu0 0
    %98 = vperm.xlu0 %97, %v95
    %v99 = vpop.permute.xlu0 %98
    %v101 = vperm.slane %v99, 0
    %v102 = vadd.f32 %v93, %v101
    %104 = vset.pattern.permute.xlu0 0
    %105 = vperm.xlu0 %104, %v102
    %v106 = vpop.permute.xlu0 %105
    %v107 = vlaneseq
    %v108 = vand.u32 %v107, 127
    %v109 = vperm.slane %v106, %v108
    %vm111 = vcmask 57344
    %112 = vst.msk [vmem:[#allocation3] sm:$0x1] %vm111, %v109
    // Predicated region
    $region22: #{tpu_custom_call.1} parent=1 // pred_check
      _
    $region23: #{tpu_custom_call.1} parent=1 // pred_check_branch
      %114 = sbr.rel (0) target = $region25
    $region24: #{tpu_custom_call.1} parent=1 // pred_region
      %116 = vsyncadd [#allocation4], 0
      %s118 = sshll.u32 [#allocation3], 4
      %s119 = int_to_ptr.vmem [resolvable:$true] %s118
      %s120 = sshll.u32 %s5, 4
      %s121 = int_to_ptr.hbm [resolvable:$true] %s120
      %123 = dma.vmem_to_hbm [thread:$0]  %s119, 16, %s121, [#allocation4]
    $region25: #{tpu_custom_call.1} parent=1 // pred_fallthru
      _
    // Predicated region
    $region26: #{tpu_custom_call.1} parent=1 // pred_check
      _
    $region27: #{tpu_custom_call.1} parent=1 // pred_check_branch
      %125 = sbr.rel (0) target = $region29
    $region28: #{tpu_custom_call.1} parent=1 // pred_region
      %127 = dma.done [#allocation4], 16
    $region29: #{tpu_custom_call.1} parent=1 // pred_fallthru
      _
    %128 = vsyncpa [#allocation4], 1

</llo_original>
